<compile_context>
chip_gen: v7x
topology: tpu7x:2x2x1
jax: 0.10.0
libtpu: 0.0.40
codegen_flags: <defaults>
</compile_context>

<pallas_src>
import math

import jax
import jax.numpy as jnp
from jax.experimental import pallas as pl
from jax.experimental.pallas import tpu as pltpu


def _round_up(x, m):
    return ((x + m - 1) // m) * m


def _mlp3_kernel(x_ref, w1_ref, b1_ref, w2_ref, b2_ref, w3_ref, b3_ref, z_ref):
    """Fused 3-layer encoder for one (view, batch-tile) grid cell.

    relu(relu(x@W1+b1)@W2+b2)@W3+b3 with bf16 MXU operands, f32 accumulation,
    and f32 elementwise (bias + ReLU).
    """
    x = x_ref[0]                                                    # (tb, D) bf16
    h1 = jnp.dot(x, w1_ref[0], preferred_element_type=jnp.float32) + b1_ref[0]
    h1 = jnp.maximum(h1, 0.0)
    h2 = jnp.dot(h1.astype(jnp.bfloat16), w2_ref[0],
                 preferred_element_type=jnp.float32) + b2_ref[0]
    h2 = jnp.maximum(h2, 0.0)
    z = jnp.dot(h2.astype(jnp.bfloat16), w3_ref[0],
                preferred_element_type=jnp.float32) + b3_ref[0]
    z_ref[0] = z.astype(z_ref.dtype)                                # lane-dense store


def mfc_forward(xv0, xv1, xv2, stacked_params, *, n_z, tb_max=512):
    """Run the fused 3-view encoder.  Returns (z0, z1, z2), each [N, n_z] f32."""
    w1, b1, w2, b2, w3, b3 = stacked_params
    n = xv0.shape[0]
    d_pad = w1.shape[1]
    h1_pad = w1.shape[2]
    h2_pad = w2.shape[2]
    z_pad = w3.shape[2]

    # Big batch tile; pad batch so no divisibility assert is needed.
    tb = min(tb_max, _round_up(n, 8))
    n_pad = _round_up(n, tb)

    def pad_view(xv):
        xp = jnp.zeros((n_pad, d_pad), jnp.bfloat16)
        return xp.at[: xv.shape[0], : xv.shape[1]].set(xv.astype(jnp.bfloat16))

    # Stack the three (padded) views into one [3, N_pad, D_pad] input.
    x = jnp.stack([pad_view(xv0), pad_view(xv1), pad_view(xv2)], axis=0)

    grid = (3, n_pad // tb)

    def per_view(shape):
        # Weight/bias block: pick this view's slab, resident across batch tiles.
        return pl.BlockSpec(shape, lambda v, i: (v, 0, 0))

    out = pl.pallas_call(
        _mlp3_kernel,
        out_shape=jax.ShapeDtypeStruct((3, n_pad, z_pad), jnp.float32),
        grid_spec=pl.GridSpec(
            grid=grid,
            in_specs=[
                pl.BlockSpec((1, tb, d_pad), lambda v, i: (v, i, 0)),
                per_view((1, d_pad, h1_pad)),
                per_view((1, 1, h1_pad)),
                per_view((1, h1_pad, h2_pad)),
                per_view((1, 1, h2_pad)),
                per_view((1, h2_pad, z_pad)),
                per_view((1, 1, z_pad)),
            ],
            out_specs=pl.BlockSpec((1, tb, z_pad), lambda v, i: (v, i, 0)),
        ),
        compiler_params=pltpu.CompilerParams(
            dimension_semantics=("parallel", "parallel")
        ),
    )(x, w1, b1, w2, b2, w3, b3)

    return out[0, :n, :n_z], out[1, :n, :n_z], out[2, :n, :n_z]


def xavier_uniform(key, fan_in, fan_out, dtype=jnp.float32):
    """Matches nn.init.xavier_uniform_ (gain=1)."""
    bound = math.sqrt(6.0 / (fan_in + fan_out))
    return jax.random.uniform(
        key, (fan_in, fan_out), dtype=dtype, minval=-bound, maxval=bound
    )


class MFCPallas:
    """JAX/Pallas equivalent of MFC.forward: x0, x1, x2 -> (z0, z1, z2)."""

    def __init__(self, key, n_input, hidden=(64, 64), n_z=16):
        self.n_z = n_z
        d_pad = _round_up(max(n_input), 128)
        h1_pad = _round_up(hidden[0], 128)
        h2_pad = _round_up(hidden[1], 128)
        z_pad = _round_up(n_z, 128)

        keys = jax.random.split(key, 9)
        raw_params = []
        w1_list, w2_list, w3_list = [], [], []
        for v in range(3):
            d_in = n_input[v]
            w1v = xavier_uniform(keys[3 * v + 0], d_in, hidden[0])
            w2v = xavier_uniform(keys[3 * v + 1], hidden[0], hidden[1])
            w3v = xavier_uniform(keys[3 * v + 2], hidden[1], n_z)
            raw_params.append((w1v, w2v, w3v))
            w1_list.append(
                jnp.zeros((d_pad, h1_pad), jnp.bfloat16)
                .at[:d_in, : hidden[0]].set(w1v.astype(jnp.bfloat16)))
            w2_list.append(
                jnp.zeros((h1_pad, h2_pad), jnp.bfloat16)
                .at[: hidden[0], : hidden[1]].set(w2v.astype(jnp.bfloat16)))
            w3_list.append(
                jnp.zeros((h2_pad, z_pad), jnp.bfloat16)
                .at[: hidden[1], :n_z].set(w3v.astype(jnp.bfloat16)))

        # Unpadded f32 weights kept only for the reference check below.
        self.raw_params = raw_params
        # Biases are zero per MFC.__init__ (nn.init.constant_(m.bias, 0.0)).
        self.stacked_params = (
            jnp.stack(w1_list), jnp.zeros((3, 1, h1_pad), jnp.float32),
            jnp.stack(w2_list), jnp.zeros((3, 1, h2_pad), jnp.float32),
            jnp.stack(w3_list), jnp.zeros((3, 1, z_pad), jnp.float32),
        )

    def __call__(self, xv0, xv1, xv2):
        return mfc_forward(xv0, xv1, xv2, self.stacked_params, n_z=self.n_z)


if __name__ == "__main__":
    key = jax.random.PRNGKey(0)
    k_params, k0, k1, k2 = jax.random.split(key, 4)

    batch = 16
    n_input = [32, 48, 64]   # per-view input feature dims
    hidden = (64, 64)
    n_z = 16

    model = MFCPallas(k_params, n_input, hidden=hidden, n_z=n_z)

    x0 = jax.random.normal(k0, (batch, n_input[0]), jnp.float32)
    x1 = jax.random.normal(k1, (batch, n_input[1]), jnp.float32)
    x2 = jax.random.normal(k2, (batch, n_input[2]), jnp.float32)

    z0, z1, z2 = model(x0, x1, x2)
    jax.block_until_ready((z0, z1, z2))

    # Pure-JAX references: (a) mirroring the kernel's bf16 MXU / f32-accumulate
    # math (tight check of plumbing), (b) pure f32 module semantics (loose
    # check that only absorbs bf16 rounding).
    def ref_bf16(x, p):
        w1, w2, w3 = p
        xb = x.astype(jnp.bfloat16)
        h1 = jnp.maximum(jnp.dot(xb, w1.astype(jnp.bfloat16),
                                 preferred_element_type=jnp.float32), 0.0)
        h2 = jnp.maximum(jnp.dot(h1.astype(jnp.bfloat16), w2.astype(jnp.bfloat16),
                                 preferred_element_type=jnp.float32), 0.0)
        return jnp.dot(h2.astype(jnp.bfloat16), w3.astype(jnp.bfloat16),
                       preferred_element_type=jnp.float32)

    def ref_f32(x, p):
        w1, w2, w3 = p
        h1 = jnp.maximum(x @ w1, 0.0)
        h2 = jnp.maximum(h1 @ w2, 0.0)
        return h2 @ w3

    for z, x, p in ((z0, x0, model.raw_params[0]),
                    (z1, x1, model.raw_params[1]),
                    (z2, x2, model.raw_params[2])):
        assert z.shape == (batch, n_z)
        assert jnp.allclose(z, ref_bf16(x, p), atol=1e-2, rtol=1e-2)
        assert jnp.allclose(z, ref_f32(x, p), atol=5e-2, rtol=5e-2)

    print("KERNEL_OK")
</pallas_src>

<mosaic_0001>
module attributes {stable_mosaic.version = 11 : i64} {
  func.func @_mlp3_kernel(%arg0: i32, %arg1: i32, %arg2: memref<1x16x128xbf16, #tpu.memory_space<vmem>>, %arg3: memref<1x128x128xbf16, #tpu.memory_space<vmem>>, %arg4: memref<1x1x128xf32, #tpu.memory_space<vmem>>, %arg5: memref<1x128x128xbf16, #tpu.memory_space<vmem>>, %arg6: memref<1x1x128xf32, #tpu.memory_space<vmem>>, %arg7: memref<1x128x128xbf16, #tpu.memory_space<vmem>>, %arg8: memref<1x1x128xf32, #tpu.memory_space<vmem>>, %arg9: memref<1x16x128xf32, #tpu.memory_space<vmem>>) attributes {dimension_semantics = [#tpu.dimension_semantics<parallel>, #tpu.dimension_semantics<parallel>], iteration_bounds = array<i64: 3, 1>, scalar_prefetch = 0 : i64, scratch_operands = 0 : i64, tpu.core_type = #tpu.core_type<tc>, window_params = [{transform_indices = @transform_0, window_bounds = array<i64: 1, 16, 128>}, {transform_indices = @transform_1, window_bounds = array<i64: 1, 128, 128>}, {transform_indices = @transform_2, window_bounds = array<i64: 1, 1, 128>}, {transform_indices = @transform_3, window_bounds = array<i64: 1, 128, 128>}, {transform_indices = @transform_4, window_bounds = array<i64: 1, 1, 128>}, {transform_indices = @transform_5, window_bounds = array<i64: 1, 128, 128>}, {transform_indices = @transform_6, window_bounds = array<i64: 1, 1, 128>}, {transform_indices = @transform_7, window_bounds = array<i64: 1, 16, 128>}]} {
    %c0 = arith.constant 0 : index
    %c0_0 = arith.constant 0 : index
    %c0_1 = arith.constant 0 : index
    %0 = vector.load %arg2[%c0, %c0_0, %c0_1] : memref<1x16x128xbf16, #tpu.memory_space<vmem>>, vector<1x16x128xbf16>
    %1 = vector.shape_cast %0 : vector<1x16x128xbf16> to vector<16x128xbf16>
    %c0_2 = arith.constant 0 : index
    %c0_3 = arith.constant 0 : index
    %c0_4 = arith.constant 0 : index
    %2 = vector.load %arg3[%c0_2, %c0_3, %c0_4] : memref<1x128x128xbf16, #tpu.memory_space<vmem>>, vector<1x128x128xbf16>
    %3 = vector.shape_cast %2 : vector<1x128x128xbf16> to vector<128x128xbf16>
    %cst = arith.constant dense<0.000000e+00> : vector<16x128xf32>
    %4 = tpu.matmul %1, %3, %cst {dimension_numbers = #tpu.dot_dimension_numbers<[1], [0], [0], [1], [0, 0, 1, 1], [], []>} : vector<16x128xbf16>, vector<128x128xbf16>, vector<16x128xf32> -> vector<16x128xf32>
    %c0_5 = arith.constant 0 : index
    %c0_6 = arith.constant 0 : index
    %c0_7 = arith.constant 0 : index
    %5 = vector.load %arg4[%c0_5, %c0_6, %c0_7] : memref<1x1x128xf32, #tpu.memory_space<vmem>>, vector<1x1x128xf32>
    %6 = vector.shape_cast %5 : vector<1x1x128xf32> to vector<1x128xf32>
    %7 = vector.broadcast %6 : vector<1x128xf32> to vector<16x128xf32>
    %8 = arith.addf %4, %7 : vector<16x128xf32>
    %cst_8 = arith.constant 0.000000e+00 : f32
    %9 = vector.broadcast %cst_8 : f32 to vector<16x128xf32>
    %10 = arith.maximumf %8, %9 : vector<16x128xf32>
    %11 = arith.truncf %10 : vector<16x128xf32> to vector<16x128xbf16>
    %c0_9 = arith.constant 0 : index
    %c0_10 = arith.constant 0 : index
    %c0_11 = arith.constant 0 : index
    %12 = vector.load %arg5[%c0_9, %c0_10, %c0_11] : memref<1x128x128xbf16, #tpu.memory_space<vmem>>, vector<1x128x128xbf16>
    %13 = vector.shape_cast %12 : vector<1x128x128xbf16> to vector<128x128xbf16>
    %cst_12 = arith.constant dense<0.000000e+00> : vector<16x128xf32>
    %14 = tpu.matmul %11, %13, %cst_12 {dimension_numbers = #tpu.dot_dimension_numbers<[1], [0], [0], [1], [0, 0, 1, 1], [], []>} : vector<16x128xbf16>, vector<128x128xbf16>, vector<16x128xf32> -> vector<16x128xf32>
    %c0_13 = arith.constant 0 : index
    %c0_14 = arith.constant 0 : index
    %c0_15 = arith.constant 0 : index
    %15 = vector.load %arg6[%c0_13, %c0_14, %c0_15] : memref<1x1x128xf32, #tpu.memory_space<vmem>>, vector<1x1x128xf32>
    %16 = vector.shape_cast %15 : vector<1x1x128xf32> to vector<1x128xf32>
    %17 = vector.broadcast %16 : vector<1x128xf32> to vector<16x128xf32>
    %18 = arith.addf %14, %17 : vector<16x128xf32>
    %cst_16 = arith.constant 0.000000e+00 : f32
    %19 = vector.broadcast %cst_16 : f32 to vector<16x128xf32>
    %20 = arith.maximumf %18, %19 : vector<16x128xf32>
    %21 = arith.truncf %20 : vector<16x128xf32> to vector<16x128xbf16>
    %c0_17 = arith.constant 0 : index
    %c0_18 = arith.constant 0 : index
    %c0_19 = arith.constant 0 : index
    %22 = vector.load %arg7[%c0_17, %c0_18, %c0_19] : memref<1x128x128xbf16, #tpu.memory_space<vmem>>, vector<1x128x128xbf16>
    %23 = vector.shape_cast %22 : vector<1x128x128xbf16> to vector<128x128xbf16>
    %cst_20 = arith.constant dense<0.000000e+00> : vector<16x128xf32>
    %24 = tpu.matmul %21, %23, %cst_20 {dimension_numbers = #tpu.dot_dimension_numbers<[1], [0], [0], [1], [0, 0, 1, 1], [], []>} : vector<16x128xbf16>, vector<128x128xbf16>, vector<16x128xf32> -> vector<16x128xf32>
    %c0_21 = arith.constant 0 : index
    %c0_22 = arith.constant 0 : index
    %c0_23 = arith.constant 0 : index
    %25 = vector.load %arg8[%c0_21, %c0_22, %c0_23] : memref<1x1x128xf32, #tpu.memory_space<vmem>>, vector<1x1x128xf32>
    %26 = vector.shape_cast %25 : vector<1x1x128xf32> to vector<1x128xf32>
    %27 = vector.broadcast %26 : vector<1x128xf32> to vector<16x128xf32>
    %28 = arith.addf %24, %27 : vector<16x128xf32>
    %c0_24 = arith.constant 0 : index
    %c0_25 = arith.constant 0 : index
    %c0_26 = arith.constant 0 : index
    %29 = vector.load %arg9[%c0_24, %c0_25, %c0_26] : memref<1x16x128xf32, #tpu.memory_space<vmem>>, vector<1x16x128xf32>
    %30 = vector.shape_cast %29 : vector<1x16x128xf32> to vector<16x128xf32>
    %31 = vector.shape_cast %28 : vector<16x128xf32> to vector<1x16x128xf32>
    tpu.vector_store %arg9[%c0_24, %c0_25, %c0_26], %31 {strides = array<i32>} : memref<1x16x128xf32, #tpu.memory_space<vmem>>, vector<1x16x128xf32>,
    return
  }
  func.func @transform_0(%arg0: i32, %arg1: i32) -> (i32, i32, i32) {
    %c0_i32 = arith.constant 0 : i32
    %c0_i32_0 = arith.constant 0 : i32
    return %arg0, %arg1, %c0_i32 : i32, i32, i32
  }
  func.func @transform_1(%arg0: i32, %arg1: i32) -> (i32, i32, i32) {
    %c0_i32 = arith.constant 0 : i32
    %c0_i32_0 = arith.constant 0 : i32
    %c0_i32_1 = arith.constant 0 : i32
    return %arg0, %c0_i32, %c0_i32_0 : i32, i32, i32
  }
  func.func @transform_2(%arg0: i32, %arg1: i32) -> (i32, i32, i32) {
    %c0_i32 = arith.constant 0 : i32
    %c0_i32_0 = arith.constant 0 : i32
    %c0_i32_1 = arith.constant 0 : i32
    return %arg0, %c0_i32, %c0_i32_0 : i32, i32, i32
  }
  func.func @transform_3(%arg0: i32, %arg1: i32) -> (i32, i32, i32) {
    %c0_i32 = arith.constant 0 : i32
    %c0_i32_0 = arith.constant 0 : i32
    %c0_i32_1 = arith.constant 0 : i32
    return %arg0, %c0_i32, %c0_i32_0 : i32, i32, i32
  }
  func.func @transform_4(%arg0: i32, %arg1: i32) -> (i32, i32, i32) {
    %c0_i32 = arith.constant 0 : i32
    %c0_i32_0 = arith.constant 0 : i32
    %c0_i32_1 = arith.constant 0 : i32
    return %arg0, %c0_i32, %c0_i32_0 : i32, i32, i32
  }
  func.func @transform_5(%arg0: i32, %arg1: i32) -> (i32, i32, i32) {
    %c0_i32 = arith.constant 0 : i32
    %c0_i32_0 = arith.constant 0 : i32
    %c0_i32_1 = arith.constant 0 : i32
    return %arg0, %c0_i32, %c0_i32_0 : i32, i32, i32
  }
  func.func @transform_6(%arg0: i32, %arg1: i32) -> (i32, i32, i32) {
    %c0_i32 = arith.constant 0 : i32
    %c0_i32_0 = arith.constant 0 : i32
    %c0_i32_1 = arith.constant 0 : i32
    return %arg0, %c0_i32, %c0_i32_0 : i32, i32, i32
  }
  func.func @transform_7(%arg0: i32, %arg1: i32) -> (i32, i32, i32) {
    %c0_i32 = arith.constant 0 : i32
    %c0_i32_0 = arith.constant 0 : i32
    return %arg0, %arg1, %c0_i32 : i32, i32, i32
  }
}

</mosaic_0001>

<llo_original>
// kernel: tpu_custom_call.1
$region0: #{tpu_custom_call.1}
  #allocation0 [shape = 'u32[]', space=smem, size = 0x4, offset = 0x4, fixed_abs, tag = 'smem constant byte address 0x4 - core index']
  #allocation1 [shape = 'u32[144,128]{1,0:T(1,128)}', space=vmem, size = 0x12000, scoped, tag = 'internal scratch']
  %s0 = inlined_call_operand.hbm [shape: bf16[3,16,128], index: 0, kind: input, shape index: {}]
  %s1 = inlined_call_operand.hbm [shape: bf16[3,128,128], index: 1, kind: input, shape index: {}]
  %s2 = inlined_call_operand.vmem [shape: f32[3,1,128], index: 2, kind: input, shape index: {}]
  %s3 = inlined_call_operand.hbm [shape: bf16[3,128,128], index: 3, kind: input, shape index: {}]
  %s4 = inlined_call_operand.vmem [shape: f32[3,1,128], index: 4, kind: input, shape index: {}]
  %s5 = inlined_call_operand.hbm [shape: bf16[3,128,128], index: 5, kind: input, shape index: {}]
  %s6 = inlined_call_operand.vmem [shape: f32[3,1,128], index: 6, kind: input, shape index: {}]
  %s7 = inlined_call_operand.hbm [shape: f32[3,16,128], index: 7, kind: output, shape index: {}]
  %s8 = sld [smem:[#allocation0]]
  $region77: #{tpu_custom_call.1} parent=0
    _
  %s10 = ssub.s32 1, %s8
  %s11 = scalar_select 0, %s10, %s8
  $region1: #{tpu_custom_call.1} parent=0
    #allocation2 [shape = 'u8[8192]{0}', space=vmem, size = 0x2000, scoped, tag = 'input window, operand 0']
    #allocation3 [shape = 's32[2]{0}', space=sflag, size = 0x8, scoped, tag = 'scoped memory for tpu_custom_call.1']
    #allocation4 [shape = 's32[2]{0}', space=sflag, size = 0x8, scoped, tag = 'scoped memory for tpu_custom_call.1']
    #allocation5 [shape = 'u8[65536]{0}', space=vmem, size = 0x10000, scoped, tag = 'input window, operand 1']
    #allocation6 [shape = 's32[2]{0}', space=sflag, size = 0x8, scoped, tag = 'scoped memory for tpu_custom_call.1']
    #allocation7 [shape = 'u8[65536]{0}', space=vmem, size = 0x10000, scoped, tag = 'input window, operand 3']
    #allocation8 [shape = 'u8[65536]{0}', space=vmem, size = 0x10000, scoped, tag = 'input window, operand 5']
    #allocation9 [shape = 's32[2]{0}', space=sflag, size = 0x8, scoped, tag = 'scoped memory for tpu_custom_call.1']
    #allocation10 [shape = 'u8[16384]{0}', space=vmem, size = 0x4000, scoped, tag = 'output window, operand 0']
    %12 = vsyncpa [#allocation3], 0
    %s13 = scalar_lea.sflag [#allocation3], 1
    %14 = vsyncpa %s13, 0
    %15 = vsyncpa [#allocation6], 0
    %s16 = scalar_lea.sflag [#allocation6], 1
    %17 = vsyncpa %s16, 0
    %18 = vsyncpa [#allocation9], 0
    %s19 = scalar_lea.sflag [#allocation9], 1
    %20 = vsyncpa %s19, 0
    %21 = vsyncpa [#allocation4], 0
    %s22 = scalar_lea.sflag [#allocation4], 1
    %23 = vsyncpa %s22, 0
    loop: start=0, step=1, limit=5
    $region2: #{tpu_custom_call.1} parent=1 // loop_pre_header
      _
    $region3: #{tpu_custom_call.1} parent=1 // loop_header
      %s25 = sphi 0, %s29
      %p26 = scmp.ge.s32.totalorder %s25, 5
      %s32 = sphi 0, %s44
      %s33 = sphi 0, %s40
      %s34 = sphi 0, %s32
      %s35 = sphi 0, %s33
      %s36 = sphi 0, %s34
      %s37 = sphi 0, %s35
      %s49 = sphi 0, %s51
      %s52 = sphi 0, %s49
      %s53 = sphi 0, %s52
      %s69 = sphi 0, %s53
      %s75 = sphi 0, %s77
      %s78 = sphi 0, %s75
      %s79 = sphi 0, %s78
      %s95 = sphi 0, %s79
      %s101 = sphi 0, %s103
      %s104 = sphi 0, %s101
      %s105 = sphi 0, %s104
      %s121 = sphi 0, %s105
      %s127 = sphi 0, %s129
      %s130 = sphi 0, %s127
      %s131 = sphi 0, %s130
      %s147 = sphi 0, %s131
      %s153 = sphi 0, %s155
      %s156 = sphi 0, %s153
      %s157 = sphi 0, %s156
      %s173 = sphi 0, %s157
      %s179 = sphi 0, %s181
      %s182 = sphi 0, %s179
      %s183 = sphi 0, %s182
      %s199 = sphi 0, %s183
      %s205 = sphi 0, %s207
      %s208 = sphi 0, %s205
      %s209 = sphi 0, %s208
      %s225 = sphi 0, %s209
      %s233 = sphi 0, %s235
      %s236 = sphi 0, %s233
      %s237 = sphi 0, %s236
      %s253 = sphi 0, %s237
    $region4: #{tpu_custom_call.1} parent=1 // loop_header_branch
      %28 = sbr.rel (%p26) target = $region8
    $region5: #{tpu_custom_call.1} parent=1 // loop_body
      %s30 = ssub.s32 %s25, 1
      %s31 = ssub.s32 %s25, 2
      %s38 = sadd.s32 1, %s33
      %p39 = scmp.ge.s32.totalorder %s38, 1
      %s40 = scalar_select %p39, 0, %s38
      %s41 = sadd.s32 1, %s32
      %s42 = scalar_select %p39, %s41, %s32
      %p43 = scmp.ge.s32.totalorder %s42, 3
      %s44 = scalar_select %p43, 0, %s42
      %s45 = ssub.s32 %s32, %s44
      %s46 = ssub.s32 %s33, %s40
      %s47 = sor.u32 %s45, %s46
      %p48 = scmp.eq.s32.totalorder %s47, 0
      %s50 = sadd.s32 %s49, 1
      %s51 = scalar_select %p48, %s49, %s50
      %p54 = pneg %p48
      %p55 = scmp.eq.s32.totalorder %s25, 2
      %p56 = por %p54, %p55
      %p57 = scmp.ne.s32.totalorder %s49, %s52
      %p58 = scmp.eq.s32.totalorder %s25, 0
      %p59 = por %p57, %p58
      %p60 = scmp.ne.s32.totalorder %s49, %s52
      %p61 = scmp.eq.s32.totalorder %s30, 2
      %p62 = por %p60, %p61
      %p63 = scmp.ne.s32.totalorder %s52, %s53
      %p64 = scmp.eq.s32.totalorder %s30, 0
      %p65 = por %p63, %p64
      %p66 = scmp.ne.s32.totalorder %s52, %s53
      %p67 = scmp.eq.s32.totalorder %s31, 2
      %p68 = por %p66, %p67
      %p70 = scmp.ne.s32.totalorder %s53, %s69
      %p71 = scmp.eq.s32.totalorder %s31, 0
      %p72 = por %p70, %p71
      %s73 = ssub.s32 %s32, %s44
      %p74 = scmp.eq.s32.totalorder %s73, 0
      %s76 = sadd.s32 %s75, 1
      %s77 = scalar_select %p74, %s75, %s76
      %p80 = pneg %p74
      %p81 = scmp.eq.s32.totalorder %s25, 2
      %p82 = por %p80, %p81
      %p83 = scmp.ne.s32.totalorder %s75, %s78
      %p84 = scmp.eq.s32.totalorder %s25, 0
      %p85 = por %p83, %p84
      %p86 = scmp.ne.s32.totalorder %s75, %s78
      %p87 = scmp.eq.s32.totalorder %s30, 2
      %p88 = por %p86, %p87
      %p89 = scmp.ne.s32.totalorder %s78, %s79
      %p90 = scmp.eq.s32.totalorder %s30, 0
      %p91 = por %p89, %p90
      %p92 = scmp.ne.s32.totalorder %s78, %s79
      %p93 = scmp.eq.s32.totalorder %s31, 2
      %p94 = por %p92, %p93
      %p96 = scmp.ne.s32.totalorder %s79, %s95
      %p97 = scmp.eq.s32.totalorder %s31, 0
      %p98 = por %p96, %p97
      %s99 = ssub.s32 %s32, %s44
      %p100 = scmp.eq.s32.totalorder %s99, 0
      %s102 = sadd.s32 %s101, 1
      %s103 = scalar_select %p100, %s101, %s102
      %p106 = pneg %p100
      %p107 = scmp.eq.s32.totalorder %s25, 2
      %p108 = por %p106, %p107
      %p109 = scmp.ne.s32.totalorder %s101, %s104
      %p110 = scmp.eq.s32.totalorder %s25, 0
      %p111 = por %p109, %p110
      %p112 = scmp.ne.s32.totalorder %s101, %s104
      %p113 = scmp.eq.s32.totalorder %s30, 2
      %p114 = por %p112, %p113
      %p115 = scmp.ne.s32.totalorder %s104, %s105
      %p116 = scmp.eq.s32.totalorder %s30, 0
      %p117 = por %p115, %p116
      %p118 = scmp.ne.s32.totalorder %s104, %s105
      %p119 = scmp.eq.s32.totalorder %s31, 2
      %p120 = por %p118, %p119
      %p122 = scmp.ne.s32.totalorder %s105, %s121
      %p123 = scmp.eq.s32.totalorder %s31, 0
      %p124 = por %p122, %p123
      %s125 = ssub.s32 %s32, %s44
      %p126 = scmp.eq.s32.totalorder %s125, 0
      %s128 = sadd.s32 %s127, 1
      %s129 = scalar_select %p126, %s127, %s128
      %p132 = pneg %p126
      %p133 = scmp.eq.s32.totalorder %s25, 2
      %p134 = por %p132, %p133
      %p135 = scmp.ne.s32.totalorder %s127, %s130
      %p136 = scmp.eq.s32.totalorder %s25, 0
      %p137 = por %p135, %p136
      %p138 = scmp.ne.s32.totalorder %s127, %s130
      %p139 = scmp.eq.s32.totalorder %s30, 2
      %p140 = por %p138, %p139
      %p141 = scmp.ne.s32.totalorder %s130, %s131
      %p142 = scmp.eq.s32.totalorder %s30, 0
      %p143 = por %p141, %p142
      %p144 = scmp.ne.s32.totalorder %s130, %s131
      %p145 = scmp.eq.s32.totalorder %s31, 2
      %p146 = por %p144, %p145
      %p148 = scmp.ne.s32.totalorder %s131, %s147
      %p149 = scmp.eq.s32.totalorder %s31, 0
      %p150 = por %p148, %p149
      %s151 = ssub.s32 %s32, %s44
      %p152 = scmp.eq.s32.totalorder %s151, 0
      %s154 = sadd.s32 %s153, 1
      %s155 = scalar_select %p152, %s153, %s154
      %p158 = pneg %p152
      %p159 = scmp.eq.s32.totalorder %s25, 2
      %p160 = por %p158, %p159
      %p161 = scmp.ne.s32.totalorder %s153, %s156
      %p162 = scmp.eq.s32.totalorder %s25, 0
      %p163 = por %p161, %p162
      %p164 = scmp.ne.s32.totalorder %s153, %s156
      %p165 = scmp.eq.s32.totalorder %s30, 2
      %p166 = por %p164, %p165
      %p167 = scmp.ne.s32.totalorder %s156, %s157
      %p168 = scmp.eq.s32.totalorder %s30, 0
      %p169 = por %p167, %p168
      %p170 = scmp.ne.s32.totalorder %s156, %s157
      %p171 = scmp.eq.s32.totalorder %s31, 2
      %p172 = por %p170, %p171
      %p174 = scmp.ne.s32.totalorder %s157, %s173
      %p175 = scmp.eq.s32.totalorder %s31, 0
      %p176 = por %p174, %p175
      %s177 = ssub.s32 %s32, %s44
      %p178 = scmp.eq.s32.totalorder %s177, 0
      %s180 = sadd.s32 %s179, 1
      %s181 = scalar_select %p178, %s179, %s180
      %p184 = pneg %p178
      %p185 = scmp.eq.s32.totalorder %s25, 2
      %p186 = por %p184, %p185
      %p187 = scmp.ne.s32.totalorder %s179, %s182
      %p188 = scmp.eq.s32.totalorder %s25, 0
      %p189 = por %p187, %p188
      %p190 = scmp.ne.s32.totalorder %s179, %s182
      %p191 = scmp.eq.s32.totalorder %s30, 2
      %p192 = por %p190, %p191
      %p193 = scmp.ne.s32.totalorder %s182, %s183
      %p194 = scmp.eq.s32.totalorder %s30, 0
      %p195 = por %p193, %p194
      %p196 = scmp.ne.s32.totalorder %s182, %s183
      %p197 = scmp.eq.s32.totalorder %s31, 2
      %p198 = por %p196, %p197
      %p200 = scmp.ne.s32.totalorder %s183, %s199
      %p201 = scmp.eq.s32.totalorder %s31, 0
      %p202 = por %p200, %p201
      %s203 = ssub.s32 %s32, %s44
      %p204 = scmp.eq.s32.totalorder %s203, 0
      %s206 = sadd.s32 %s205, 1
      %s207 = scalar_select %p204, %s205, %s206
      %p210 = pneg %p204
      %p211 = scmp.eq.s32.totalorder %s25, 2
      %p212 = por %p210, %p211
      %p213 = scmp.ne.s32.totalorder %s205, %s208
      %p214 = scmp.eq.s32.totalorder %s25, 0
      %p215 = por %p213, %p214
      %p216 = scmp.ne.s32.totalorder %s205, %s208
      %p217 = scmp.eq.s32.totalorder %s30, 2
      %p218 = por %p216, %p217
      %p219 = scmp.ne.s32.totalorder %s208, %s209
      %p220 = scmp.eq.s32.totalorder %s30, 0
      %p221 = por %p219, %p220
      %p222 = scmp.ne.s32.totalorder %s208, %s209
      %p223 = scmp.eq.s32.totalorder %s31, 2
      %p224 = por %p222, %p223
      %p226 = scmp.ne.s32.totalorder %s209, %s225
      %p227 = scmp.eq.s32.totalorder %s31, 0
      %p228 = por %p226, %p227
      %s229 = ssub.s32 %s32, %s44
      %s230 = ssub.s32 %s33, %s40
      %s231 = sor.u32 %s229, %s230
      %p232 = scmp.eq.s32.totalorder %s231, 0
      %s234 = sadd.s32 %s233, 1
      %s235 = scalar_select %p232, %s233, %s234
      %p238 = pneg %p232
      %p239 = scmp.eq.s32.totalorder %s25, 2
      %p240 = por %p238, %p239
      %p241 = scmp.ne.s32.totalorder %s233, %s236
      %p242 = scmp.eq.s32.totalorder %s25, 0
      %p243 = por %p241, %p242
      %p244 = scmp.ne.s32.totalorder %s233, %s236
      %p245 = scmp.eq.s32.totalorder %s30, 2
      %p246 = por %p244, %p245
      %p247 = scmp.ne.s32.totalorder %s236, %s237
      %p248 = scmp.eq.s32.totalorder %s30, 0
      %p249 = por %p247, %p248
      %p250 = scmp.ne.s32.totalorder %s236, %s237
      %p251 = scmp.eq.s32.totalorder %s31, 2
      %p252 = por %p250, %p251
      %p254 = scmp.ne.s32.totalorder %s237, %s253
      %p255 = scmp.eq.s32.totalorder %s31, 0
      %p256 = por %p254, %p255
      %p257 = scmp.le.s32.totalorder 1, %s25
      %p258 = scmp.lt.s32.totalorder %s25, 4
      %p259 = pnand %p257, %p258
      %p260 = pneg %p259
      // Predicated region
      $region9: #{tpu_custom_call.1} parent=5 // pred_check
        _
      $region10: #{tpu_custom_call.1} parent=5 // pred_check_branch
        %262 = sbr.rel (%p259) target = $region12
      $region11: #{tpu_custom_call.1} parent=5 // pred_region
        %s263 = ssub.s32 %s25, 1
      $region12: #{tpu_custom_call.1} parent=5 // pred_fallthru
        _
      %p264 = scmp.lt.s32.totalorder %s25, 3
      // Predicated region
      $region13: #{tpu_custom_call.1} parent=5 // pred_check
        %p265 = pneg %p264
      $region14: #{tpu_custom_call.1} parent=5 // pred_check_branch
        %267 = sbr.rel (%p265) target = $region16
      $region15: #{tpu_custom_call.1} parent=5 // pred_region
        // Predicated region
        $region17: #{tpu_custom_call.1} parent=15 // pred_check
          %p268 = pneg %p59
        $region18: #{tpu_custom_call.1} parent=15 // pred_check_branch
          %270 = sbr.rel (%p268) target = $region20
        $region19: #{tpu_custom_call.1} parent=15 // pred_region
          %s271 = sand.u32 %s49, 1
          %s272 = scalar_lea.sflag [#allocation3], %s271
          %s273 = sand.u32 %s49, 1
          %s274 = smul.addr %s273, 8
          %s275 = scalar_lea.vmem [#allocation2], %s274
          %s276 = smul.u32 2, %s33
          %s278 = ssub.s32 128, 128
          %279 = vsyncadd %s272, %s278
          %s280 = smul.addr %s32, 2
          %s281 = sadd.s32 %s276, %s280
          %s282 = smul.addr %s281, 64
          %s283 = scalar_lea.hbm %s0, %s282
          %s284 = sshll.u32 %s275, 4
          %s285 = int_to_ptr.vmem [resolvable:$true] %s284
          %290 = dma.hbm_to_vmem [thread:$0]  %s283, 128, %s285, %s272, 64, 64, 4
        $region20: #{tpu_custom_call.1} parent=15 // pred_fallthru
          _
        // Predicated region
        $region21: #{tpu_custom_call.1} parent=15 // pred_check
          %p291 = pneg %p85
        $region22: #{tpu_custom_call.1} parent=15 // pred_check_branch
          %293 = sbr.rel (%p291) target = $region24
        $region23: #{tpu_custom_call.1} parent=15 // pred_region
          %s294 = sand.u32 %s25, 1
          %s295 = scalar_lea.sflag [#allocation6], %s294
          %s296 = sand.u32 %s75, 1
          %s297 = smul.addr %s296, 64
          %s298 = scalar_lea.vmem [#allocation5], %s297
          %s300 = ssub.s32 1024, 1024
          %301 = vsyncadd %s295, %s300
          %s302 = smul.addr %s32, 16
          %s303 = smul.addr %s302, 64
          %s304 = scalar_lea.hbm %s1, %s303
          %s305 = sshll.u32 %s298, 4
          %s306 = int_to_ptr.vmem [resolvable:$true] %s305
          %311 = dma.hbm_to_vmem [thread:$0]  %s304, 1024, %s306, %s295, 64, 64, 4
        $region24: #{tpu_custom_call.1} parent=15 // pred_fallthru
          _
        // Predicated region
        $region25: #{tpu_custom_call.1} parent=15 // pred_check
          %p312 = pneg %p111
        $region26: #{tpu_custom_call.1} parent=15 // pred_check_branch
          %314 = sbr.rel (%p312) target = $region28
        $region27: #{tpu_custom_call.1} parent=15 // pred_region
          %p315 = scmp.lt.s32.totalorder %s32, 2
          %s316 = scalar_select %p315, %s32, 2
          %s317 = scalar_lea.vmem %s2, %s316
        $region28: #{tpu_custom_call.1} parent=15 // pred_fallthru
          _
        // Predicated region
        $region29: #{tpu_custom_call.1} parent=15 // pred_check
          %p318 = pneg %p137
        $region30: #{tpu_custom_call.1} parent=15 // pred_check_branch
          %320 = sbr.rel (%p318) target = $region32
        $region31: #{tpu_custom_call.1} parent=15 // pred_region
          %s321 = sand.u32 %s25, 1
          %s322 = scalar_lea.sflag [#allocation6], %s321
          %s323 = sand.u32 %s127, 1
          %s324 = smul.addr %s323, 64
          %s325 = scalar_lea.vmem [#allocation7], %s324
          %s327 = ssub.s32 1024, 1024
          %328 = vsyncadd %s322, %s327
          %s329 = smul.addr %s32, 16
          %s330 = smul.addr %s329, 64
          %s331 = scalar_lea.hbm %s3, %s330
          %s332 = sshll.u32 %s325, 4
          %s333 = int_to_ptr.vmem [resolvable:$true] %s332
          %338 = dma.hbm_to_vmem [thread:$0]  %s331, 1024, %s333, %s322, 64, 64, 4
        $region32: #{tpu_custom_call.1} parent=15 // pred_fallthru
          _
        // Predicated region
        $region33: #{tpu_custom_call.1} parent=15 // pred_check
          %p339 = pneg %p163
        $region34: #{tpu_custom_call.1} parent=15 // pred_check_branch
          %341 = sbr.rel (%p339) target = $region36
        $region35: #{tpu_custom_call.1} parent=15 // pred_region
          %p342 = scmp.lt.s32.totalorder %s32, 2
          %s343 = scalar_select %p342, %s32, 2
          %s344 = scalar_lea.vmem %s4, %s343
        $region36: #{tpu_custom_call.1} parent=15 // pred_fallthru
          _
        // Predicated region
        $region37: #{tpu_custom_call.1} parent=15 // pred_check
          %p345 = pneg %p189
        $region38: #{tpu_custom_call.1} parent=15 // pred_check_branch
          %347 = sbr.rel (%p345) target = $region40
        $region39: #{tpu_custom_call.1} parent=15 // pred_region
          %s348 = sand.u32 %s179, 1
          %s349 = scalar_lea.sflag [#allocation9], %s348
          %s350 = sand.u32 %s179, 1
          %s351 = smul.addr %s350, 64
          %s352 = scalar_lea.vmem [#allocation8], %s351
          %s354 = ssub.s32 1024, 1024
          %355 = vsyncadd %s349, %s354
          %s356 = smul.addr %s32, 16
          %s357 = smul.addr %s356, 64
          %s358 = scalar_lea.hbm %s5, %s357
          %s359 = sshll.u32 %s352, 4
          %s360 = int_to_ptr.vmem [resolvable:$true] %s359
          %365 = dma.hbm_to_vmem [thread:$0]  %s358, 1024, %s360, %s349, 64, 64, 4
        $region40: #{tpu_custom_call.1} parent=15 // pred_fallthru
          _
        // Predicated region
        $region41: #{tpu_custom_call.1} parent=15 // pred_check
          %p366 = pneg %p215
        $region42: #{tpu_custom_call.1} parent=15 // pred_check_branch
          %368 = sbr.rel (%p366) target = $region44
        $region43: #{tpu_custom_call.1} parent=15 // pred_region
          %p369 = scmp.lt.s32.totalorder %s32, 2
          %s370 = scalar_select %p369, %s32, 2
          %s371 = scalar_lea.vmem %s6, %s370
        $region44: #{tpu_custom_call.1} parent=15 // pred_fallthru
          _
      $region16: #{tpu_custom_call.1} parent=5 // pred_fallthru
        _
      %p372 = scmp.le.s32.totalorder 1, %s25
      %p373 = scmp.lt.s32.totalorder %s25, 4
      %p374 = pnand %p372, %p373
      %p375 = pneg %p374
      // Predicated region
      $region45: #{tpu_custom_call.1} parent=5 // pred_check
        _
      $region46: #{tpu_custom_call.1} parent=5 // pred_check_branch
        %377 = sbr.rel (%p374) target = $region48
      $region47: #{tpu_custom_call.1} parent=5 // pred_region
        %s378 = ssub.s32 %s25, 1
        %s379 = sand.u32 %s52, 1
        %s380 = scalar_lea.sflag [#allocation3], %s379
        %s381 = sand.u32 %s52, 1
        %s382 = smul.addr %s381, 8
        %s383 = scalar_lea.vmem [#allocation2], %s382
        // Predicated region
        $region49: #{tpu_custom_call.1} parent=47 // pred_check
          %p384 = pneg %p65
        $region50: #{tpu_custom_call.1} parent=47 // pred_check_branch
          %386 = sbr.rel (%p384) target = $region52
        $region51: #{tpu_custom_call.1} parent=47 // pred_region
          %387 = dma.done %s380, 128
        $region52: #{tpu_custom_call.1} parent=47 // pred_fallthru
          _
        %s388 = sand.u32 %s30, 1
        %s389 = scalar_lea.sflag [#allocation6], %s388
        %s390 = sand.u32 %s78, 1
        %s391 = smul.addr %s390, 64
        %s392 = scalar_lea.vmem [#allocation5], %s391
        // Predicated region
        $region53: #{tpu_custom_call.1} parent=47 // pred_check
          %p393 = pneg %p91
        $region54: #{tpu_custom_call.1} parent=47 // pred_check_branch
          %395 = sbr.rel (%p393) target = $region56
        $region55: #{tpu_custom_call.1} parent=47 // pred_region
          %396 = dma.done %s389, 1024
        $region56: #{tpu_custom_call.1} parent=47 // pred_fallthru
          _
        %s397 = sand.u32 %s30, 1
        %s398 = scalar_lea.sflag [#allocation6], %s397
        %s399 = sand.u32 %s130, 1
        %s400 = smul.addr %s399, 64
        %s401 = scalar_lea.vmem [#allocation7], %s400
        // Predicated region
        $region57: #{tpu_custom_call.1} parent=47 // pred_check
          %p402 = pneg %p143
        $region58: #{tpu_custom_call.1} parent=47 // pred_check_branch
          %404 = sbr.rel (%p402) target = $region60
        $region59: #{tpu_custom_call.1} parent=47 // pred_region
          %405 = dma.done %s398, 1024
        $region60: #{tpu_custom_call.1} parent=47 // pred_fallthru
          _
        %s406 = sand.u32 %s182, 1
        %s407 = scalar_lea.sflag [#allocation9], %s406
        %s408 = sand.u32 %s182, 1
        %s409 = smul.addr %s408, 64
        %s410 = scalar_lea.vmem [#allocation8], %s409
        // Predicated region
        $region61: #{tpu_custom_call.1} parent=47 // pred_check
          %p411 = pneg %p195
        $region62: #{tpu_custom_call.1} parent=47 // pred_check_branch
          %413 = sbr.rel (%p411) target = $region64
        $region63: #{tpu_custom_call.1} parent=47 // pred_region
          %414 = dma.done %s407, 1024
        $region64: #{tpu_custom_call.1} parent=47 // pred_fallthru
          _
        %s415 = sand.u32 %s52, 1
        %s416 = scalar_lea.sflag [#allocation3], %s415
        %s417 = sand.u32 %s52, 1
        %s418 = smul.addr %s417, 8
        %s419 = scalar_lea.vmem [#allocation2], %s418
        %p420 = pneg %p65
        %p421 = pneg %p62
        %s422 = sand.u32 %s30, 1
        %s423 = scalar_lea.sflag [#allocation6], %s422
        %s424 = sand.u32 %s78, 1
        %s425 = smul.addr %s424, 64
        %s426 = scalar_lea.vmem [#allocation5], %s425
        %p427 = pneg %p91
        %p428 = pneg %p88
        %p429 = scmp.lt.s32.totalorder %s34, 2
        %s430 = scalar_select %p429, %s34, 2
        %s431 = scalar_lea.vmem %s2, %s430
        %p432 = pneg %p117
        %p433 = pneg %p114
        %s434 = sand.u32 %s30, 1
        %s435 = scalar_lea.sflag [#allocation6], %s434
        %s436 = sand.u32 %s130, 1
        %s437 = smul.addr %s436, 64
        %s438 = scalar_lea.vmem [#allocation7], %s437
        %p439 = pneg %p143
        %p440 = pneg %p140
        %p441 = scmp.lt.s32.totalorder %s34, 2
        %s442 = scalar_select %p441, %s34, 2
        %s443 = scalar_lea.vmem %s4, %s442
        %p444 = pneg %p169
        %p445 = pneg %p166
        %s446 = sand.u32 %s182, 1
        %s447 = scalar_lea.sflag [#allocation9], %s446
        %s448 = sand.u32 %s182, 1
        %s449 = smul.addr %s448, 64
        %s450 = scalar_lea.vmem [#allocation8], %s449
        %p451 = pneg %p195
        %p452 = pneg %p192
        %p453 = scmp.lt.s32.totalorder %s34, 2
        %s454 = scalar_select %p453, %s34, 2
        %s455 = scalar_lea.vmem %s6, %s454
        %p456 = pneg %p221
        %p457 = pneg %p218
        %p458 = pneg %p249
        %p459 = pneg %p246
        %s460 = sand.u32 %s236, 1
        %s461 = scalar_lea.sflag [#allocation4], %s460
        %s462 = sand.u32 %s236, 1
        %s463 = smul.addr %s462, 16
        %s464 = scalar_lea.vmem [#allocation10], %s463
        %s465 = smul.u32 2, %s35
        %p466 = scmp.lt.s32.totalorder %s34, 2
        %s467 = scalar_select %p466, %s34, 2
        %s468 = scalar_lea.vmem %s2, %s467
        %p469 = scmp.lt.s32.totalorder %s34, 2
        %s470 = scalar_select %p469, %s34, 2
        %s471 = scalar_lea.vmem %s4, %s470
        %p472 = scmp.lt.s32.totalorder %s34, 2
        %s473 = scalar_select %p472, %s34, 2
        %s474 = scalar_lea.vmem %s6, %s473
        %s475 = smul.u32 2, %s35
        %v477 = vld [vmem:[%s383] sm:$0xf]
        %v478 = vld [vmem:[%s383 + $0x4] sm:$0xf]
        %v479 = vld [vmem:[%s392] sm:$0xf]
        %v480 = vld [vmem:[%s392 + $0x4] sm:$0xf]
        %v481 = vld [vmem:[%s392 + $0x8] sm:$0xf]
        %v482 = vld [vmem:[%s392 + $0xc] sm:$0xf]
        %v483 = vld [vmem:[%s392 + $0x10] sm:$0xf]
        %v484 = vld [vmem:[%s392 + $0x14] sm:$0xf]
        %v485 = vld [vmem:[%s392 + $0x18] sm:$0xf]
        %v486 = vld [vmem:[%s392 + $0x1c] sm:$0xf]
        %v487 = vld [vmem:[%s392 + $0x20] sm:$0xf]
        %v488 = vld [vmem:[%s392 + $0x24] sm:$0xf]
        %v489 = vld [vmem:[%s392 + $0x28] sm:$0xf]
        %v490 = vld [vmem:[%s392 + $0x2c] sm:$0xf]
        %v491 = vld [vmem:[%s392 + $0x30] sm:$0xf]
        %v492 = vld [vmem:[%s392 + $0x34] sm:$0xf]
        %v493 = vld [vmem:[%s392 + $0x38] sm:$0xf]
        %v494 = vld [vmem:[%s392 + $0x3c] sm:$0xf]
        %v495 = vld [vmem:[%s468] sm:$0x1]
        %v497 = vlaneseq
        %v498 = vshrl.u32 %v497, 7
        %v499 = vsub.s32 0, %v498
        %v500 = vrot.slane %v495, %v499
        %v504 = vunpack.c.l.b16 %v477
        %v505 = vunpack.c.l.b16 %v478
        %v506 = vpack.c.b16 %v505, %v504
        %v524 = vunpack.c.l.b16 %v479
        %v525 = vunpack.c.l.b16 %v480
        %v526 = vunpack.c.l.b16 %v481
        %v527 = vunpack.c.l.b16 %v482
        %v528 = vunpack.c.l.b16 %v483
        %v529 = vunpack.c.l.b16 %v484
        %v530 = vunpack.c.l.b16 %v485
        %v531 = vunpack.c.l.b16 %v486
        %v532 = vunpack.c.l.b16 %v487
        %v533 = vunpack.c.l.b16 %v488
        %v534 = vunpack.c.l.b16 %v489
        %v535 = vunpack.c.l.b16 %v490
        %v536 = vunpack.c.l.b16 %v491
        %v537 = vunpack.c.l.b16 %v492
        %v538 = vunpack.c.l.b16 %v493
        %v539 = vunpack.c.l.b16 %v494
        %v540 = vpack.c.b16 %v525, %v524
        %v541 = vpack.c.b16 %v527, %v526
        %v542 = vpack.c.b16 %v529, %v528
        %v543 = vpack.c.b16 %v531, %v530
        %v544 = vpack.c.b16 %v533, %v532
        %v545 = vpack.c.b16 %v535, %v534
        %v546 = vpack.c.b16 %v537, %v536
        %v547 = vpack.c.b16 %v539, %v538
        %556 = vmatprep.subr.bf16.mxu0 0
        %557 = vmatpush1.bf16.msra.mxu0 %v540
        %558 = vmatprep.subr.bf16.mxu0 0
        %559 = vmatpush1.bf16.msra.mxu0 %v541
        %560 = vmatprep.subr.bf16.mxu0 0
        %561 = vmatpush1.bf16.msra.mxu0 %v542
        %562 = vmatprep.subr.bf16.mxu0 0
        %563 = vmatpush1.bf16.msra.mxu0 %v543
        %564 = vmatprep.subr.bf16.mxu0 0
        %565 = vmatpush1.bf16.msra.mxu0 %v544
        %566 = vmatprep.subr.bf16.mxu0 0
        %567 = vmatpush1.bf16.msra.mxu0 %v545
        %568 = vmatprep.subr.bf16.mxu0 0
        %569 = vmatpush1.bf16.msra.mxu0 %v546
        %570 = vmatprep.subr.bf16.mxu0 0
        %571 = vmatpush1.bf16.msra.mxu0 %v547
        %572 = vmatprep.subr.bf16.mxu0 0
        %573 = vmatpush1.bf16.msra.mxu0 0
        %574 = vmatprep.subr.bf16.mxu0 0
        %575 = vmatpush1.bf16.msra.mxu0 0
        %576 = vmatprep.subr.bf16.mxu0 0
        %577 = vmatpush1.bf16.msra.mxu0 0
        %578 = vmatprep.subr.bf16.mxu0 0
        %579 = vmatpush1.bf16.msra.mxu0 0
        %580 = vmatprep.subr.bf16.mxu0 0
        %581 = vmatpush1.bf16.msra.mxu0 0
        %582 = vmatprep.subr.bf16.mxu0 0
        %583 = vmatpush1.bf16.msra.mxu0 0
        %584 = vmatprep.subr.bf16.mxu0 0
        %585 = vmatpush1.bf16.msra.mxu0 0
        %586 = vmatprep.subr.bf16.mxu0 0
        %587 = vmatpush1.bf16.msra.mxu0 0
        %588 = vmatprep.mubr.bf16.mxu0 0
        %589 = vmatmul.mubr.bf16.gmra.mrb[0].mxu0 %v506
        %v590 = vpop.f32.mrb[0].mxu0
        %v591 = vadd.f32 %v500, %v590
        %v592 = vpop.f32.mrb[0].mxu0
        %v593 = vpop.f32.mrb[0].mxu0
        %v594 = vadd.f32 %v500, %v593
        %v595 = vpop.f32.mrb[0].mxu0
        %596 = vdwg.mxu0
        %v597 = vmax.f32 %v591, 0.0
        %v598 = vmax.f32 %v594, 0.0
        %v599 = vpack.c.bf16 %v598, %v597
        %v600 = vld [vmem:[%s401] sm:$0xf]
        %v601 = vld [vmem:[%s401 + $0x4] sm:$0xf]
        %v602 = vld [vmem:[%s401 + $0x8] sm:$0xf]
        %v603 = vld [vmem:[%s401 + $0xc] sm:$0xf]
        %v604 = vld [vmem:[%s401 + $0x10] sm:$0xf]
        %v605 = vld [vmem:[%s401 + $0x14] sm:$0xf]
        %v606 = vld [vmem:[%s401 + $0x18] sm:$0xf]
        %v607 = vld [vmem:[%s401 + $0x1c] sm:$0xf]
        %v608 = vld [vmem:[%s401 + $0x20] sm:$0xf]
        %v609 = vld [vmem:[%s401 + $0x24] sm:$0xf]
        %v610 = vld [vmem:[%s401 + $0x28] sm:$0xf]
        %v611 = vld [vmem:[%s401 + $0x2c] sm:$0xf]
        %v612 = vld [vmem:[%s401 + $0x30] sm:$0xf]
        %v613 = vld [vmem:[%s401 + $0x34] sm:$0xf]
        %v614 = vld [vmem:[%s401 + $0x38] sm:$0xf]
        %v615 = vld [vmem:[%s401 + $0x3c] sm:$0xf]
        %v616 = vld [vmem:[%s471] sm:$0x1]
        %v618 = vlaneseq
        %v619 = vshrl.u32 %v618, 7
        %v620 = vsub.s32 0, %v619
        %v621 = vrot.slane %v616, %v620
        %v639 = vunpack.c.l.b16 %v600
        %v640 = vunpack.c.l.b16 %v601
        %v641 = vunpack.c.l.b16 %v602
        %v642 = vunpack.c.l.b16 %v603
        %v643 = vunpack.c.l.b16 %v604
        %v644 = vunpack.c.l.b16 %v605
        %v645 = vunpack.c.l.b16 %v606
        %v646 = vunpack.c.l.b16 %v607
        %v647 = vunpack.c.l.b16 %v608
        %v648 = vunpack.c.l.b16 %v609
        %v649 = vunpack.c.l.b16 %v610
        %v650 = vunpack.c.l.b16 %v611
        %v651 = vunpack.c.l.b16 %v612
        %v652 = vunpack.c.l.b16 %v613
        %v653 = vunpack.c.l.b16 %v614
        %v654 = vunpack.c.l.b16 %v615
        %v655 = vpack.c.b16 %v640, %v639
        %v656 = vpack.c.b16 %v642, %v641
        %v657 = vpack.c.b16 %v644, %v643
        %v658 = vpack.c.b16 %v646, %v645
        %v659 = vpack.c.b16 %v648, %v647
        %v660 = vpack.c.b16 %v650, %v649
        %v661 = vpack.c.b16 %v652, %v651
        %v662 = vpack.c.b16 %v654, %v653
        %671 = vmatprep.subr.bf16.mxu0 0
        %672 = vmatpush1.bf16.msra.mxu0 %v655
        %673 = vmatprep.subr.bf16.mxu0 0
        %674 = vmatpush1.bf16.msra.mxu0 %v656
        %675 = vmatprep.subr.bf16.mxu0 0
        %676 = vmatpush1.bf16.msra.mxu0 %v657
        %677 = vmatprep.subr.bf16.mxu0 0
        %678 = vmatpush1.bf16.msra.mxu0 %v658
        %679 = vmatprep.subr.bf16.mxu0 0
        %680 = vmatpush1.bf16.msra.mxu0 %v659
        %681 = vmatprep.subr.bf16.mxu0 0
        %682 = vmatpush1.bf16.msra.mxu0 %v660
        %683 = vmatprep.subr.bf16.mxu0 0
        %684 = vmatpush1.bf16.msra.mxu0 %v661
        %685 = vmatprep.subr.bf16.mxu0 0
        %686 = vmatpush1.bf16.msra.mxu0 %v662
        %687 = vmatprep.subr.bf16.mxu0 0
        %688 = vmatpush1.bf16.msra.mxu0 0
        %689 = vmatprep.subr.bf16.mxu0 0
        %690 = vmatpush1.bf16.msra.mxu0 0
        %691 = vmatprep.subr.bf16.mxu0 0
        %692 = vmatpush1.bf16.msra.mxu0 0
        %693 = vmatprep.subr.bf16.mxu0 0
        %694 = vmatpush1.bf16.msra.mxu0 0
        %695 = vmatprep.subr.bf16.mxu0 0
        %696 = vmatpush1.bf16.msra.mxu0 0
        %697 = vmatprep.subr.bf16.mxu0 0
        %698 = vmatpush1.bf16.msra.mxu0 0
        %699 = vmatprep.subr.bf16.mxu0 0
        %700 = vmatpush1.bf16.msra.mxu0 0
        %701 = vmatprep.subr.bf16.mxu0 0
        %702 = vmatpush1.bf16.msra.mxu0 0
        %703 = vmatprep.mubr.bf16.mxu0 0
        %704 = vmatmul.mubr.bf16.gmra.mrb[0].mxu0 %v599
        %v705 = vpop.f32.mrb[0].mxu0
        %v706 = vadd.f32 %v621, %v705
        %v707 = vpop.f32.mrb[0].mxu0
        %v708 = vpop.f32.mrb[0].mxu0
        %v709 = vadd.f32 %v621, %v708
        %v710 = vpop.f32.mrb[0].mxu0
        %711 = vdwg.mxu0
        %v712 = vmax.f32 %v706, 0.0
        %v713 = vmax.f32 %v709, 0.0
        %v714 = vpack.c.bf16 %v713, %v712
        %v715 = vld [vmem:[%s410] sm:$0xf]
        %v716 = vld [vmem:[%s410 + $0x4] sm:$0xf]
        %v717 = vld [vmem:[%s410 + $0x8] sm:$0xf]
        %v718 = vld [vmem:[%s410 + $0xc] sm:$0xf]
        %v719 = vld [vmem:[%s410 + $0x10] sm:$0xf]
        %v720 = vld [vmem:[%s410 + $0x14] sm:$0xf]
        %v721 = vld [vmem:[%s410 + $0x18] sm:$0xf]
        %v722 = vld [vmem:[%s410 + $0x1c] sm:$0xf]
        %v723 = vld [vmem:[%s410 + $0x20] sm:$0xf]
        %v724 = vld [vmem:[%s410 + $0x24] sm:$0xf]
        %v725 = vld [vmem:[%s410 + $0x28] sm:$0xf]
        %v726 = vld [vmem:[%s410 + $0x2c] sm:$0xf]
        %v727 = vld [vmem:[%s410 + $0x30] sm:$0xf]
        %v728 = vld [vmem:[%s410 + $0x34] sm:$0xf]
        %v729 = vld [vmem:[%s410 + $0x38] sm:$0xf]
        %v730 = vld [vmem:[%s410 + $0x3c] sm:$0xf]
        %v731 = vld [vmem:[%s474] sm:$0x1]
        %v733 = vlaneseq
        %v734 = vshrl.u32 %v733, 7
        %v735 = vsub.s32 0, %v734
        %v736 = vrot.slane %v731, %v735
        %v754 = vunpack.c.l.b16 %v715
        %v755 = vunpack.c.l.b16 %v716
        %v756 = vunpack.c.l.b16 %v717
        %v757 = vunpack.c.l.b16 %v718
        %v758 = vunpack.c.l.b16 %v719
        %v759 = vunpack.c.l.b16 %v720
        %v760 = vunpack.c.l.b16 %v721
        %v761 = vunpack.c.l.b16 %v722
        %v762 = vunpack.c.l.b16 %v723
        %v763 = vunpack.c.l.b16 %v724
        %v764 = vunpack.c.l.b16 %v725
        %v765 = vunpack.c.l.b16 %v726
        %v766 = vunpack.c.l.b16 %v727
        %v767 = vunpack.c.l.b16 %v728
        %v768 = vunpack.c.l.b16 %v729
        %v769 = vunpack.c.l.b16 %v730
        %v770 = vpack.c.b16 %v755, %v754
        %v771 = vpack.c.b16 %v757, %v756
        %v772 = vpack.c.b16 %v759, %v758
        %v773 = vpack.c.b16 %v761, %v760
        %v774 = vpack.c.b16 %v763, %v762
        %v775 = vpack.c.b16 %v765, %v764
        %v776 = vpack.c.b16 %v767, %v766
        %v777 = vpack.c.b16 %v769, %v768
        %786 = vmatprep.subr.bf16.mxu0 0
        %787 = vmatpush1.bf16.msra.mxu0 %v770
        %788 = vmatprep.subr.bf16.mxu0 0
        %789 = vmatpush1.bf16.msra.mxu0 %v771
        %790 = vmatprep.subr.bf16.mxu0 0
        %791 = vmatpush1.bf16.msra.mxu0 %v772
        %792 = vmatprep.subr.bf16.mxu0 0
        %793 = vmatpush1.bf16.msra.mxu0 %v773
        %794 = vmatprep.subr.bf16.mxu0 0
        %795 = vmatpush1.bf16.msra.mxu0 %v774
        %796 = vmatprep.subr.bf16.mxu0 0
        %797 = vmatpush1.bf16.msra.mxu0 %v775
        %798 = vmatprep.subr.bf16.mxu0 0
        %799 = vmatpush1.bf16.msra.mxu0 %v776
        %800 = vmatprep.subr.bf16.mxu0 0
        %801 = vmatpush1.bf16.msra.mxu0 %v777
        %802 = vmatprep.subr.bf16.mxu0 0
        %803 = vmatpush1.bf16.msra.mxu0 0
        %804 = vmatprep.subr.bf16.mxu0 0
        %805 = vmatpush1.bf16.msra.mxu0 0
        %806 = vmatprep.subr.bf16.mxu0 0
        %807 = vmatpush1.bf16.msra.mxu0 0
        %808 = vmatprep.subr.bf16.mxu0 0
        %809 = vmatpush1.bf16.msra.mxu0 0
        %810 = vmatprep.subr.bf16.mxu0 0
        %811 = vmatpush1.bf16.msra.mxu0 0
        %812 = vmatprep.subr.bf16.mxu0 0
        %813 = vmatpush1.bf16.msra.mxu0 0
        %814 = vmatprep.subr.bf16.mxu0 0
        %815 = vmatpush1.bf16.msra.mxu0 0
        %816 = vmatprep.subr.bf16.mxu0 0
        %817 = vmatpush1.bf16.msra.mxu0 0
        %818 = vmatprep.mubr.bf16.mxu0 0
        %819 = vmatmul.mubr.bf16.gmra.mrb[0].mxu0 %v714
        %v820 = vpop.f32.mrb[0].mxu0
        %v821 = vadd.f32 %v736, %v820
        %v822 = vpop.f32.mrb[0].mxu0
        %v823 = vpop.f32.mrb[0].mxu0
        %v824 = vadd.f32 %v736, %v823
        %v825 = vpop.f32.mrb[0].mxu0
        %826 = vdwg.mxu0
        %827 = vst [vmem:[%s464] sm:$0xff] %v821
        %828 = vst [vmem:[%s464 + $0x8] sm:$0xff] %v824
        %s829 = sand.u32 %s236, 1
        %s830 = scalar_lea.sflag [#allocation4], %s829
        %s831 = sand.u32 %s236, 1
        %s832 = smul.addr %s831, 16
        %s833 = scalar_lea.vmem [#allocation10], %s832
        // Predicated region
        $region65: #{tpu_custom_call.1} parent=47 // pred_check
          %p834 = pneg %p246
        $region66: #{tpu_custom_call.1} parent=47 // pred_check_branch
          %836 = sbr.rel (%p834) target = $region68
        $region67: #{tpu_custom_call.1} parent=47 // pred_region
          %s837 = smul.u32 2, %s35
          %s839 = ssub.s32 256, 256
          %840 = vsyncadd %s830, %s839
          %s841 = smul.addr %s34, 2
          %s842 = sadd.s32 %s837, %s841
          %s843 = smul.addr %s842, 128
          %s844 = scalar_lea.hbm %s7, %s843
          %s845 = sshll.u32 %s833, 4
          %s846 = int_to_ptr.vmem [resolvable:$true] %s845
          %851 = dma.vmem_to_hbm [thread:$0]  %s846, 256, %s844, %s830, 128, 128, 8
        $region68: #{tpu_custom_call.1} parent=47 // pred_fallthru
          _
      $region48: #{tpu_custom_call.1} parent=5 // pred_fallthru
        _
      %p852 = scmp.le.s32.totalorder 2, %s25
      // Predicated region
      $region69: #{tpu_custom_call.1} parent=5 // pred_check
        %p853 = pneg %p852
      $region70: #{tpu_custom_call.1} parent=5 // pred_check_branch
        %855 = sbr.rel (%p853) target = $region72
      $region71: #{tpu_custom_call.1} parent=5 // pred_region
        %s856 = ssub.s32 %s25, 2
        // Predicated region
        $region73: #{tpu_custom_call.1} parent=71 // pred_check
          %p857 = pneg %p252
        $region74: #{tpu_custom_call.1} parent=71 // pred_check_branch
          %859 = sbr.rel (%p857) target = $region76
        $region75: #{tpu_custom_call.1} parent=71 // pred_region
          %s860 = sand.u32 %s237, 1
          %s861 = scalar_lea.sflag [#allocation4], %s860
          %s862 = sand.u32 %s237, 1
          %s863 = smul.addr %s862, 16
          %s864 = scalar_lea.vmem [#allocation10], %s863
          %865 = dma.done %s861, 256
        $region76: #{tpu_custom_call.1} parent=71 // pred_fallthru
          _
      $region72: #{tpu_custom_call.1} parent=5 // pred_fallthru
        _
    $region6: #{tpu_custom_call.1} parent=1 // loop_footer
      %s29 = sadd.s32 1, %s25
    $region7: #{tpu_custom_call.1} parent=1 // loop_footer_branch
      %24 = sbr.rel target = $region3
    $region8: #{tpu_custom_call.1} parent=1 // loop_exit
      _
    %866 = vsyncpa [#allocation3], 1
    %s867 = scalar_lea.sflag [#allocation3], 1
    %868 = vsyncpa %s867, 1
    %869 = vsyncpa [#allocation6], 1
    %s870 = scalar_lea.sflag [#allocation6], 1
    %871 = vsyncpa %s870, 1
    %872 = vsyncpa [#allocation9], 1
    %s873 = scalar_lea.sflag [#allocation9], 1
    %874 = vsyncpa %s873, 1
    %875 = vsyncpa [#allocation4], 1
    %s876 = scalar_lea.sflag [#allocation4], 1
    %877 = vsyncpa %s876, 1

</llo_original>
